<compile_context>
chip_gen: v5e
topology: v5e:2x2
jax: 0.10.0
libtpu: 0.0.40
codegen_flags: <defaults>
</compile_context>

<pallas_src>
import functools

import jax
import jax.numpy as jnp
from jax.experimental import pallas as pl
from jax.experimental.pallas import tpu as pltpu


def _sampled_xent_rows_kernel(logit_ref, diag_blk_ref, out_ref, *, tm, B):
    i = pl.program_id(0)

    # (tm, B) stripe of rows; upcast per-tile (supports bf16 inputs).
    x = logit_ref[...].astype(jnp.float32)

    # Numerically-stable logsumexp over the class (lane) axis.
    m = jnp.max(x, axis=-1, keepdims=True)                          # (tm, 1)
    s = jnp.sum(jnp.exp(x - m), axis=-1, keepdims=True)             # (tm, 1)
    lse = jnp.log(s) + m                                            # (tm, 1)

    # Positive class for global row g is column g: it lives on the diagonal of
    # the (tm, tm) square slab at block index (i, i).  Mask + lane reduce over
    # only tm lanes (cheap; keeps the XLU free for the lse reductions).
    d = diag_blk_ref[...].astype(jnp.float32)                       # (tm, tm)
    r = jax.lax.broadcasted_iota(jnp.int32, (tm, tm), 0)
    c = jax.lax.broadcasted_iota(jnp.int32, (tm, tm), 1)
    diag = jnp.sum(jnp.where(r == c, d, 0.0), axis=-1, keepdims=True)  # (tm, 1)

    contrib = lse - diag                                            # (tm, 1)

    # Zero rows past B in a ragged last tile (their writeback is clipped too).
    grow = i * tm + jax.lax.broadcasted_iota(jnp.int32, (tm, 1), 0)
    out_ref[...] = jnp.where(grow < B, contrib, 0.0)


def sampled_cross_entropy_loss(logit, *, tm=256, vmem_limit_bytes=48 * 1024 * 1024):
    """logit: (B, B) array (f32 or bf16). Returns scalar float32 loss."""
    assert logit.ndim == 2 and logit.shape[0] == logit.shape[1], (
        "sampled XE loss requires a square (batch_size, batch_size) logit")
    B = logit.shape[0]

    # Tile choice: single full-array tile for small B (block == full dims, so
    # the (8,128) rule is trivially satisfied); otherwise a tm-row stripe with
    # tm a multiple of 128 (needed for the (tm, tm) diagonal-slab block).
    tm_eff = B if B <= tm else tm
    assert tm_eff == B or tm_eff % 128 == 0, "row tile must be a multiple of 128"
    num_tiles = pl.cdiv(B, tm_eff)

    kernel = functools.partial(_sampled_xent_rows_kernel, tm=tm_eff, B=B)

    per_row = pl.pallas_call(
        kernel,
        out_shape=jax.ShapeDtypeStruct((B, 1), jnp.float32),
        grid=(num_tiles,),
        in_specs=[
            # full-width stripe of rows for the logsumexp
            pl.BlockSpec((tm_eff, B), lambda i: (i, 0)),
            # square slab sitting on the diagonal for the positive-class pick
            pl.BlockSpec((tm_eff, tm_eff), lambda i: (i, i)),
        ],
        out_specs=pl.BlockSpec((tm_eff, 1), lambda i: (i, 0)),
        compiler_params=pltpu.CompilerParams(
            dimension_semantics=("parallel",),
            vmem_limit_bytes=vmem_limit_bytes,
        ),
    )(logit, logit)

    # Single final division -> exactly the 'mean' reduction of the reference.
    return jnp.sum(per_row) / B


def _reference(logit):
    x = logit.astype(jnp.float32)
    lse = jax.scipy.special.logsumexp(x, axis=-1)
    return jnp.mean(lse - jnp.diagonal(x))


if __name__ == "__main__":
    key = jax.random.PRNGKey(0)

    # 1) The module's own configuration: batch_size = 5 (single full tile).
    batch_size = 5
    k1, k2, k3 = jax.random.split(key, 3)
    logit = jax.random.normal(k1, (batch_size, batch_size), dtype=jnp.float32)
    loss = jax.block_until_ready(sampled_cross_entropy_loss(logit))
    ref = _reference(logit)
    assert jnp.allclose(loss, ref, rtol=1e-5, atol=1e-5), (loss, ref)

    # 2) Multi-tile path (grid of 3 row stripes), f32.
    logit2 = jax.random.normal(k2, (384, 384), dtype=jnp.float32)
    loss2 = jax.block_until_ready(sampled_cross_entropy_loss(logit2, tm=128))
    ref2 = _reference(logit2)
    assert jnp.allclose(loss2, ref2, rtol=1e-5, atol=1e-5), (loss2, ref2)

    # 3) Ragged last tile (300 rows, 128-row tiles) with bf16 input.
    logit3 = jax.random.normal(k3, (300, 300), dtype=jnp.float32).astype(jnp.bfloat16)
    loss3 = jax.block_until_ready(sampled_cross_entropy_loss(logit3, tm=128))
    ref3 = _reference(logit3)
    assert jnp.allclose(loss3, ref3, rtol=1e-4, atol=1e-4), (loss3, ref3)

    print("KERNEL_OK")
</pallas_src>

<mosaic_0001>
module attributes {stable_mosaic.version = 11 : i64} {
  func.func @_sampled_xent_rows_kernel(%arg0: i32, %arg1: memref<5x5xf32, #tpu.memory_space<vmem>>, %arg2: memref<5x5xf32, #tpu.memory_space<vmem>>, %arg3: memref<5x1xf32, #tpu.memory_space<vmem>>) attributes {dimension_semantics = [#tpu.dimension_semantics<parallel>], iteration_bounds = array<i64: 1>, scalar_prefetch = 0 : i64, scratch_operands = 0 : i64, tpu.core_type = #tpu.core_type<tc>, window_params = [{transform_indices = @transform_0, window_bounds = array<i64: 5, 5>}, {transform_indices = @transform_1, window_bounds = array<i64: 5, 5>}, {transform_indices = @transform_2, window_bounds = array<i64: 5, 1>}]} {
    %c0 = arith.constant 0 : index
    %c0_0 = arith.constant 0 : index
    %0 = vector.load %arg1[%c0, %c0_0] : memref<5x5xf32, #tpu.memory_space<vmem>>, vector<5x5xf32>
    %cst = arith.constant dense<0xFF800000> : vector<5xf32>
    %1 = vector.multi_reduction <maximumf>, %0, %cst [1] : vector<5x5xf32> to vector<5xf32>
    %2 = vector.shape_cast %1 : vector<5xf32> to vector<5x1xf32>
    %3 = vector.broadcast %2 : vector<5x1xf32> to vector<5x5xf32>
    %4 = arith.subf %0, %3 : vector<5x5xf32>
    %5 = math.exp %4 : vector<5x5xf32>
    %cst_1 = arith.constant dense<0.000000e+00> : vector<5xf32>
    %6 = vector.multi_reduction <add>, %5, %cst_1 [1] : vector<5x5xf32> to vector<5xf32>
    %7 = vector.shape_cast %6 : vector<5xf32> to vector<5x1xf32>
    %8 = math.log %7 : vector<5x1xf32>
    %9 = arith.addf %8, %2 : vector<5x1xf32>
    %c0_2 = arith.constant 0 : index
    %c0_3 = arith.constant 0 : index
    %10 = vector.load %arg2[%c0_2, %c0_3] : memref<5x5xf32, #tpu.memory_space<vmem>>, vector<5x5xf32>
    %11 = tpu.iota {dimensions = array<i32: 0>} : vector<5x5xi32>
    %12 = tpu.iota {dimensions = array<i32: 1>} : vector<5x5xi32>
    %13 = arith.cmpi eq, %11, %12 : vector<5x5xi32>
    %cst_4 = arith.constant 0.000000e+00 : f32
    %14 = vector.broadcast %cst_4 : f32 to vector<5x5xf32>
    %15 = arith.select %13, %10, %14 : vector<5x5xi1>, vector<5x5xf32>
    %cst_5 = arith.constant dense<0.000000e+00> : vector<5xf32>
    %16 = vector.multi_reduction <add>, %15, %cst_5 [1] : vector<5x5xf32> to vector<5xf32>
    %17 = vector.shape_cast %16 : vector<5xf32> to vector<5x1xf32>
    %18 = arith.subf %9, %17 : vector<5x1xf32>
    %c5_i32 = arith.constant 5 : i32
    %19 = arith.muli %arg0, %c5_i32 : i32
    %20 = tpu.iota {dimensions = array<i32: 0>} : vector<5x1xi32>
    %21 = vector.broadcast %19 : i32 to vector<5x1xi32>
    %22 = arith.addi %21, %20 : vector<5x1xi32>
    %c5_i32_6 = arith.constant 5 : i32
    %23 = vector.broadcast %c5_i32_6 : i32 to vector<5x1xi32>
    %24 = arith.cmpi slt, %22, %23 : vector<5x1xi32>
    %cst_7 = arith.constant 0.000000e+00 : f32
    %25 = vector.broadcast %cst_7 : f32 to vector<5x1xf32>
    %26 = arith.select %24, %18, %25 : vector<5x1xi1>, vector<5x1xf32>
    %c0_8 = arith.constant 0 : index
    %c0_9 = arith.constant 0 : index
    %27 = vector.load %arg3[%c0_8, %c0_9] : memref<5x1xf32, #tpu.memory_space<vmem>>, vector<5x1xf32>
    tpu.vector_store %arg3[%c0_8, %c0_9], %26 {strides = array<i32>} : memref<5x1xf32, #tpu.memory_space<vmem>>, vector<5x1xf32>,
    return
  }
  func.func @transform_0(%arg0: i32) -> (i32, i32) {
    %c0_i32 = arith.constant 0 : i32
    %c0_i32_0 = arith.constant 0 : i32
    return %arg0, %c0_i32 : i32, i32
  }
  func.func @transform_1(%arg0: i32) -> (i32, i32) {
    %c0_i32 = arith.constant 0 : i32
    return %arg0, %arg0 : i32, i32
  }
  func.func @transform_2(%arg0: i32) -> (i32, i32) {
    %c0_i32 = arith.constant 0 : i32
    %c0_i32_0 = arith.constant 0 : i32
    return %arg0, %c0_i32 : i32, i32
  }
}

</mosaic_0001>

<llo_original>
// kernel: tpu_custom_call.1
$region0: #{tpu_custom_call.1}
  #allocation0 [shape = 'u32[]', space=smem, size = 0x4, offset = 0x4, fixed_abs, tag = 'smem constant byte address 0x4 - core index']
  #allocation1 [shape = 'u32[72,128]{1,0:T(1,128)}', space=vmem, size = 0x9000, scoped, tag = 'internal scratch']
  %s0 = inlined_call_operand.hbm [shape: f32[5,5], index: 0, kind: input, shape index: {}]
  %s1 = inlined_call_operand.hbm [shape: f32[5,5], index: 1, kind: input, shape index: {}]
  %s2 = inlined_call_operand.vmem [shape: f32[5,1], index: 2, kind: output, shape index: {}]
  %s3 = sld [smem:[#allocation0]]
  $region26: #{tpu_custom_call.1} parent=0
    _
  %s5 = ssub.s32 1, %s3
  %s6 = scalar_select 0, %s5, %s3
  $region1: #{tpu_custom_call.1} parent=0
    #allocation2 [shape = 'u8[4096]{0}', space=vmem, size = 0x1000, scoped, tag = 'input window, operand 0, single buffered']
    #allocation3 [shape = 's32[1]{0}', space=sflag, size = 0x4, scoped, tag = 'scoped memory for tpu_custom_call.1']
    #allocation4 [shape = 'u8[4096]{0}', space=vmem, size = 0x1000, scoped, tag = 'input window, operand 1, single buffered']
    #allocation5 [shape = 's32[1]{0}', space=sflag, size = 0x4, scoped, tag = 'scoped memory for tpu_custom_call.1']
    %7 = vsyncpa [#allocation3], 0
    %8 = vsyncpa [#allocation5], 0
    // Predicated region
    $region2: #{tpu_custom_call.1} parent=1 // pred_check
      _
    $region3: #{tpu_custom_call.1} parent=1 // pred_check_branch
      %10 = sbr.rel (0) target = $region5
    $region4: #{tpu_custom_call.1} parent=1 // pred_region
      %12 = vsyncadd [#allocation3], 0
      %s14 = sshll.u32 %s0, 4
      %s15 = int_to_ptr.hbm [resolvable:$true] %s14
      %s16 = sshll.u32 [#allocation2], 4
      %s17 = int_to_ptr.vmem [resolvable:$true] %s16
      %19 = dma.hbm_to_vmem [thread:$0]  %s15, 128, %s17, [#allocation3]
    $region5: #{tpu_custom_call.1} parent=1 // pred_fallthru
      _
    // Predicated region
    $region6: #{tpu_custom_call.1} parent=1 // pred_check
      _
    $region7: #{tpu_custom_call.1} parent=1 // pred_check_branch
      %21 = sbr.rel (0) target = $region9
    $region8: #{tpu_custom_call.1} parent=1 // pred_region
      %23 = vsyncadd [#allocation5], 0
      %s25 = sshll.u32 %s1, 4
      %s26 = int_to_ptr.hbm [resolvable:$true] %s25
      %s27 = sshll.u32 [#allocation4], 4
      %s28 = int_to_ptr.vmem [resolvable:$true] %s27
      %30 = dma.hbm_to_vmem [thread:$0]  %s26, 128, %s28, [#allocation5]
    $region9: #{tpu_custom_call.1} parent=1 // pred_fallthru
      _
    // Predicated region
    $region10: #{tpu_custom_call.1} parent=1 // pred_check
      _
    $region11: #{tpu_custom_call.1} parent=1 // pred_check_branch
      %32 = sbr.rel (0) target = $region13
    $region12: #{tpu_custom_call.1} parent=1 // pred_region
      %34 = dma.done [#allocation3], 128
    $region13: #{tpu_custom_call.1} parent=1 // pred_fallthru
      _
    // Predicated region
    $region14: #{tpu_custom_call.1} parent=1 // pred_check
      _
    $region15: #{tpu_custom_call.1} parent=1 // pred_check_branch
      %36 = sbr.rel (0) target = $region17
    $region16: #{tpu_custom_call.1} parent=1 // pred_region
      %38 = dma.done [#allocation5], 128
    $region17: #{tpu_custom_call.1} parent=1 // pred_fallthru
      _
    %v39 = vld [vmem:[#allocation2] sm:$0x1f]
    %vm40 = vcmask 36864
    %v41 = vsel %vm40, %v39, -inf
    %42 = vmax.xlane.f32.xlu0 %v41
    %v43 = vpop.xlane.xlu0 %42
    %v44 = vsub.f32 %v39, %v43
    %v45 = vmul.f32 %v44, 1.442695
    %v46 = vpow.pop %v45
    %v47 = vsel %vm40, %v46, 0.0
    %48 = vadd.xlane.f32.xlu0 %v47
    %v49 = vpop.xlane.xlu0 %48
    %v50 = vlog2.pop %v49
    %v51 = vmul.f32 %v50, 0.6931472
    %v52 = vadd.f32 %v51, %v43
    %v53 = vld [vmem:[#allocation4] sm:$0x1f]
    %v54 = vlaneseq
    %v55 = vshrl.u32 %v54, 7
    %v56 = vlaneseq
    %v57 = vand.u32 %v56, 127
    %vm58 = vcmp.eq.s32.totalorder %v55, %v57
    %v59 = vsel %vm58, %v53, 0.0
    %v60 = vsel %vm40, %v59, 0.0
    %61 = vadd.xlane.f32.xlu0 %v60
    %v62 = vpop.xlane.xlu0 %61
    %v63 = vsub.f32 %v52, %v62
    %s64 = smul.u32 0, 5
    %v65 = vstv %s64
    %v66 = vadd.s32 %v65, %v55
    %vm67 = vcmp.lt.s32.totalorder %v66, 5
    %v68 = vsel %vm67, %v63, 0.0
    %vm69 = vcmask 4096
    %70 = vst.msk [vmem:[%s2] sm:$0x1f] %vm69, %v68
    // Predicated region
    $region18: #{tpu_custom_call.1} parent=1 // pred_check
      _
    $region19: #{tpu_custom_call.1} parent=1 // pred_check_branch
      %72 = sbr.rel (0) target = $region21
    $region20: #{tpu_custom_call.1} parent=1 // pred_region
      _
    $region21: #{tpu_custom_call.1} parent=1 // pred_fallthru
      _
    // Predicated region
    $region22: #{tpu_custom_call.1} parent=1 // pred_check
      _
    $region23: #{tpu_custom_call.1} parent=1 // pred_check_branch
      %74 = sbr.rel (0) target = $region25
    $region24: #{tpu_custom_call.1} parent=1 // pred_region
      _
    $region25: #{tpu_custom_call.1} parent=1 // pred_fallthru
      _
    %75 = vsyncpa [#allocation3], 1
    %76 = vsyncpa [#allocation5], 1

</llo_original>
